<compile_context>
chip_gen: v5e
topology: v5e:2x2
jax: 0.10.0
libtpu: 0.0.40
codegen_flags: <defaults>
</compile_context>

<pallas_src>
import jax
import jax.numpy as jnp
from jax import lax
from jax.experimental import pallas as pl
from jax.experimental.pallas import tpu as pltpu

B, M, N, D, K = 1, 32, 32, 64, 32
K_PAD = 128            # lane-dense output width (multiple of 128)
DROP_P = 0.5


def _sdp_dropout_kernel(x1_ref, x2_ref, x3_ref, mask_ref, out_ref):
    q = x1_ref[0]        # (M, D)  float32
    k = x2_ref[0]        # (N, D)  float32
    w = x3_ref[...]      # (N, K_PAD) float32 (zero-padded beyond K)
    drop = mask_ref[0]   # (M, N)  float32: 0.0 (dropped) or 1/(1-p) (kept)

    # qk = x1 @ x2^T : contract over D without materializing a transpose.
    qk = lax.dot_general(
        q, k,
        dimension_numbers=(((1,), (1,)), ((), ())),
        preferred_element_type=jnp.float32,
    )                    # (M, N)

    # numerically-stable softmax over the last dim
    m_max = jnp.max(qk, axis=-1, keepdims=True)
    e = jnp.exp(qk - m_max)
    denom = jnp.sum(e, axis=-1, keepdims=True)
    softmax_qk = e / denom

    # dropout: mask already carries the 1/(1-p) scale -> one multiply
    dropout_qk = softmax_qk * drop

    # output = dropout_qk @ x3   -> (M, K_PAD)
    out = jnp.dot(dropout_qk, w, preferred_element_type=jnp.float32)
    out_ref[0] = out.astype(out_ref.dtype)


def sdp_dropout(x1, x2, x3, *, key):
    """x1: (B,M,D), x2: (B,N,D), x3: (N,K) -> (B,M,K). Training-mode dropout p=0.5."""
    b, m, d = x1.shape
    _, n, _ = x2.shape
    _, kk = x3.shape

    # Dropout mask (host-side jax.random; same Bernoulli(1-p) + 1/(1-p) scaling
    # semantics as torch.nn.functional.dropout in training mode).
    keep = jax.random.bernoulli(key, p=1.0 - DROP_P, shape=(b, m, n))
    mask = keep.astype(jnp.float32) * jnp.float32(1.0 / (1.0 - DROP_P))

    # Pad K to 128 so the kernel's output stores are lane-dense / unmasked.
    x3_pad = jnp.pad(x3, ((0, 0), (0, K_PAD - kk)))

    out_pad = pl.pallas_call(
        _sdp_dropout_kernel,
        out_shape=jax.ShapeDtypeStruct((b, m, K_PAD), jnp.float32),
        grid=(b,),
        in_specs=[
            pl.BlockSpec((1, m, d), lambda i: (i, 0, 0)),
            pl.BlockSpec((1, n, d), lambda i: (i, 0, 0)),
            pl.BlockSpec((n, K_PAD), lambda i: (0, 0)),
            pl.BlockSpec((1, m, n), lambda i: (i, 0, 0)),
        ],
        out_specs=pl.BlockSpec((1, m, K_PAD), lambda i: (i, 0, 0)),
        compiler_params=pltpu.CompilerParams(
            dimension_semantics=("parallel",),
        ),
    )(x1, x2, x3_pad, mask)

    return out_pad[:, :, :kk]


if __name__ == "__main__":
    key = jax.random.PRNGKey(0)
    k1, k2, k3, kd = jax.random.split(key, 4)
    x1 = jax.random.normal(k1, (B, M, D), dtype=jnp.float32)
    x2 = jax.random.normal(k2, (B, N, D), dtype=jnp.float32)
    x3 = jax.random.normal(k3, (N, K), dtype=jnp.float32)

    out = sdp_dropout(x1, x2, x3, key=kd)
    jax.block_until_ready(out)

    # Pure-JAX reference with the identical dropout mask.
    keep = jax.random.bernoulli(kd, p=1.0 - DROP_P, shape=(B, M, N))
    mask = keep.astype(jnp.float32) / (1.0 - DROP_P)
    qk = jnp.einsum("bmd,bnd->bmn", x1, x2)
    ref = jnp.einsum("bmn,nk->bmk", jax.nn.softmax(qk, axis=-1) * mask, x3)

    assert out.shape == (B, M, K), out.shape
    assert jnp.all(jnp.isfinite(out))
    assert jnp.allclose(out, ref, rtol=5e-2, atol=5e-2), float(
        jnp.max(jnp.abs(out - ref))
    )
    print("KERNEL_OK")
</pallas_src>

<mosaic_0001>
module attributes {stable_mosaic.version = 11 : i64} {
  func.func @_sdp_dropout_kernel(%arg0: i32, %arg1: memref<1x32x64xf32, #tpu.memory_space<vmem>>, %arg2: memref<1x32x64xf32, #tpu.memory_space<vmem>>, %arg3: memref<32x128xf32, #tpu.memory_space<vmem>>, %arg4: memref<1x32x32xf32, #tpu.memory_space<vmem>>, %arg5: memref<1x32x128xf32, #tpu.memory_space<vmem>>) attributes {dimension_semantics = [#tpu.dimension_semantics<parallel>], iteration_bounds = array<i64: 1>, scalar_prefetch = 0 : i64, scratch_operands = 0 : i64, tpu.core_type = #tpu.core_type<tc>, window_params = [{transform_indices = @transform_0, window_bounds = array<i64: 1, 32, 64>}, {transform_indices = @transform_1, window_bounds = array<i64: 1, 32, 64>}, {pipeline_mode = #tpu.pipeline_mode<synchronous>, transform_indices = @transform_2, window_bounds = array<i64: 32, 128>}, {transform_indices = @transform_3, window_bounds = array<i64: 1, 32, 32>}, {transform_indices = @transform_4, window_bounds = array<i64: 1, 32, 128>}]} {
    %c0 = arith.constant 0 : index
    %c0_0 = arith.constant 0 : index
    %c0_1 = arith.constant 0 : index
    %0 = vector.load %arg1[%c0, %c0_0, %c0_1] : memref<1x32x64xf32, #tpu.memory_space<vmem>>, vector<1x32x64xf32>
    %1 = vector.shape_cast %0 : vector<1x32x64xf32> to vector<32x64xf32>
    %c0_2 = arith.constant 0 : index
    %c0_3 = arith.constant 0 : index
    %c0_4 = arith.constant 0 : index
    %2 = vector.load %arg2[%c0_2, %c0_3, %c0_4] : memref<1x32x64xf32, #tpu.memory_space<vmem>>, vector<1x32x64xf32>
    %3 = vector.shape_cast %2 : vector<1x32x64xf32> to vector<32x64xf32>
    %c0_5 = arith.constant 0 : index
    %c0_6 = arith.constant 0 : index
    %4 = vector.load %arg3[%c0_5, %c0_6] : memref<32x128xf32, #tpu.memory_space<vmem>>, vector<32x128xf32>
    %c0_7 = arith.constant 0 : index
    %c0_8 = arith.constant 0 : index
    %c0_9 = arith.constant 0 : index
    %5 = vector.load %arg4[%c0_7, %c0_8, %c0_9] : memref<1x32x32xf32, #tpu.memory_space<vmem>>, vector<1x32x32xf32>
    %6 = vector.shape_cast %5 : vector<1x32x32xf32> to vector<32x32xf32>
    %cst = arith.constant dense<0.000000e+00> : vector<32x32xf32>
    %7 = tpu.matmul %1, %3, %cst {dimension_numbers = #tpu.dot_dimension_numbers<[1], [1], [0], [0], [0, 0, 1, 0], [], []>} : vector<32x64xf32>, vector<32x64xf32>, vector<32x32xf32> -> vector<32x32xf32>
    %cst_10 = arith.constant dense<0xFF800000> : vector<32xf32>
    %8 = vector.multi_reduction <maximumf>, %7, %cst_10 [1] : vector<32x32xf32> to vector<32xf32>
    %9 = vector.shape_cast %8 : vector<32xf32> to vector<32x1xf32>
    %10 = vector.broadcast %9 : vector<32x1xf32> to vector<32x32xf32>
    %11 = arith.subf %7, %10 : vector<32x32xf32>
    %12 = math.exp %11 : vector<32x32xf32>
    %cst_11 = arith.constant dense<0.000000e+00> : vector<32xf32>
    %13 = vector.multi_reduction <add>, %12, %cst_11 [1] : vector<32x32xf32> to vector<32xf32>
    %14 = vector.shape_cast %13 : vector<32xf32> to vector<32x1xf32>
    %15 = vector.broadcast %14 : vector<32x1xf32> to vector<32x32xf32>
    %16 = arith.divf %12, %15 : vector<32x32xf32>
    %17 = arith.mulf %16, %6 : vector<32x32xf32>
    %cst_12 = arith.constant dense<0.000000e+00> : vector<32x128xf32>
    %18 = tpu.matmul %17, %4, %cst_12 {dimension_numbers = #tpu.dot_dimension_numbers<[1], [0], [0], [1], [0, 0, 1, 1], [], []>} : vector<32x32xf32>, vector<32x128xf32>, vector<32x128xf32> -> vector<32x128xf32>
    %c0_13 = arith.constant 0 : index
    %c0_14 = arith.constant 0 : index
    %c0_15 = arith.constant 0 : index
    %19 = vector.load %arg5[%c0_13, %c0_14, %c0_15] : memref<1x32x128xf32, #tpu.memory_space<vmem>>, vector<1x32x128xf32>
    %20 = vector.shape_cast %19 : vector<1x32x128xf32> to vector<32x128xf32>
    %21 = vector.shape_cast %18 : vector<32x128xf32> to vector<1x32x128xf32>
    tpu.vector_store %arg5[%c0_13, %c0_14, %c0_15], %21 {strides = array<i32>} : memref<1x32x128xf32, #tpu.memory_space<vmem>>, vector<1x32x128xf32>,
    return
  }
  func.func @transform_0(%arg0: i32) -> (i32, i32, i32) {
    %c0_i32 = arith.constant 0 : i32
    %c0_i32_0 = arith.constant 0 : i32
    %c0_i32_1 = arith.constant 0 : i32
    return %arg0, %c0_i32, %c0_i32_0 : i32, i32, i32
  }
  func.func @transform_1(%arg0: i32) -> (i32, i32, i32) {
    %c0_i32 = arith.constant 0 : i32
    %c0_i32_0 = arith.constant 0 : i32
    %c0_i32_1 = arith.constant 0 : i32
    return %arg0, %c0_i32, %c0_i32_0 : i32, i32, i32
  }
  func.func @transform_2(%arg0: i32) -> (i32, i32) {
    %c0_i32 = arith.constant 0 : i32
    %c0_i32_0 = arith.constant 0 : i32
    %c0_i32_1 = arith.constant 0 : i32
    return %c0_i32, %c0_i32_0 : i32, i32
  }
  func.func @transform_3(%arg0: i32) -> (i32, i32, i32) {
    %c0_i32 = arith.constant 0 : i32
    %c0_i32_0 = arith.constant 0 : i32
    %c0_i32_1 = arith.constant 0 : i32
    return %arg0, %c0_i32, %c0_i32_0 : i32, i32, i32
  }
  func.func @transform_4(%arg0: i32) -> (i32, i32, i32) {
    %c0_i32 = arith.constant 0 : i32
    %c0_i32_0 = arith.constant 0 : i32
    %c0_i32_1 = arith.constant 0 : i32
    return %arg0, %c0_i32, %c0_i32_0 : i32, i32, i32
  }
}

</mosaic_0001>

<llo_original>
// kernel: tpu_custom_call.1
$region0: #{tpu_custom_call.1}
  #allocation0 [shape = 'u32[]', space=smem, size = 0x4, offset = 0x4, fixed_abs, tag = 'smem constant byte address 0x4 - core index']
  #allocation1 [shape = 'u32[72,128]{1,0:T(1,128)}', space=vmem, size = 0x9000, scoped, tag = 'internal scratch']
  %s0 = inlined_call_operand.hbm [shape: f32[1,32,64], index: 0, kind: input, shape index: {}]
  %s1 = inlined_call_operand.hbm [shape: f32[1,32,64], index: 1, kind: input, shape index: {}]
  %s2 = inlined_call_operand.hbm [shape: f32[32,128], index: 2, kind: input, shape index: {}]
  %s3 = inlined_call_operand.hbm [shape: f32[1,32,32], index: 3, kind: input, shape index: {}]
  %s4 = inlined_call_operand.hbm [shape: f32[1,32,128], index: 4, kind: output, shape index: {}]
  %s5 = sld [smem:[#allocation0]]
  $region42: #{tpu_custom_call.1} parent=0
    _
  %s7 = ssub.s32 1, %s5
  %s8 = scalar_select 0, %s7, %s5
  $region1: #{tpu_custom_call.1} parent=0
    #allocation2 [shape = 'u8[16384]{0}', space=vmem, size = 0x4000, scoped, tag = 'input window, operand 0, single buffered']
    #allocation3 [shape = 's32[1]{0}', space=sflag, size = 0x4, scoped, tag = 'scoped memory for tpu_custom_call.1']
    #allocation4 [shape = 's32[1]{0}', space=sflag, size = 0x4, scoped, tag = 'scoped memory for tpu_custom_call.1']
    #allocation5 [shape = 'u8[16384]{0}', space=vmem, size = 0x4000, scoped, tag = 'input window, operand 1, single buffered']
    #allocation6 [shape = 's32[1]{0}', space=sflag, size = 0x4, scoped, tag = 'scoped memory for tpu_custom_call.1']
    #allocation7 [shape = 'u8[16384]{0}', space=vmem, size = 0x4000, scoped, tag = 'input window, operand 2, single buffered']
    #allocation8 [shape = 'u8[16384]{0}', space=vmem, size = 0x4000, scoped, tag = 'input window, operand 3, single buffered']
    #allocation9 [shape = 's32[1]{0}', space=sflag, size = 0x4, scoped, tag = 'scoped memory for tpu_custom_call.1']
    #allocation10 [shape = 'u8[16384]{0}', space=vmem, size = 0x4000, scoped, tag = 'output window, operand 0, single buffered']
    %9 = vsyncpa [#allocation3], 0
    %10 = vsyncpa [#allocation6], 0
    %11 = vsyncpa [#allocation9], 0
    %12 = vsyncpa [#allocation4], 0
    // Predicated region
    $region2: #{tpu_custom_call.1} parent=1 // pred_check
      _
    $region3: #{tpu_custom_call.1} parent=1 // pred_check_branch
      %14 = sbr.rel (0) target = $region5
    $region4: #{tpu_custom_call.1} parent=1 // pred_region
      %16 = vsyncadd [#allocation3], 0
      %s17 = sshll.u32 %s0, 4
      %s18 = int_to_ptr.hbm [resolvable:$true] %s17
      %s19 = sshll.u32 [#allocation2], 4
      %s20 = int_to_ptr.vmem [resolvable:$true] %s19
      %25 = dma.hbm_to_vmem [thread:$0]  %s18, 512, %s20, [#allocation3], 128, 128, 8
    $region5: #{tpu_custom_call.1} parent=1 // pred_fallthru
      _
    // Predicated region
    $region6: #{tpu_custom_call.1} parent=1 // pred_check
      _
    $region7: #{tpu_custom_call.1} parent=1 // pred_check_branch
      %27 = sbr.rel (0) target = $region9
    $region8: #{tpu_custom_call.1} parent=1 // pred_region
      %29 = vsyncadd [#allocation6], 0
      %s30 = sshll.u32 %s1, 4
      %s31 = int_to_ptr.hbm [resolvable:$true] %s30
      %s32 = sshll.u32 [#allocation5], 4
      %s33 = int_to_ptr.vmem [resolvable:$true] %s32
      %38 = dma.hbm_to_vmem [thread:$0]  %s31, 512, %s33, [#allocation6], 128, 128, 8
    $region9: #{tpu_custom_call.1} parent=1 // pred_fallthru
      _
    // Predicated region
    $region10: #{tpu_custom_call.1} parent=1 // pred_check
      _
    $region11: #{tpu_custom_call.1} parent=1 // pred_check_branch
      %40 = sbr.rel (0) target = $region13
    $region12: #{tpu_custom_call.1} parent=1 // pred_region
      %42 = vsyncadd [#allocation6], 0
      %s43 = sshll.u32 %s2, 4
      %s44 = int_to_ptr.hbm [resolvable:$true] %s43
      %s45 = sshll.u32 [#allocation7], 4
      %s46 = int_to_ptr.vmem [resolvable:$true] %s45
      %51 = dma.hbm_to_vmem [thread:$0]  %s44, 512, %s46, [#allocation6], 128, 128, 8
    $region13: #{tpu_custom_call.1} parent=1 // pred_fallthru
      _
    // Predicated region
    $region14: #{tpu_custom_call.1} parent=1 // pred_check
      _
    $region15: #{tpu_custom_call.1} parent=1 // pred_check_branch
      %53 = sbr.rel (0) target = $region17
    $region16: #{tpu_custom_call.1} parent=1 // pred_region
      %55 = vsyncadd [#allocation9], 0
      %s56 = sshll.u32 %s3, 4
      %s57 = int_to_ptr.hbm [resolvable:$true] %s56
      %s58 = sshll.u32 [#allocation8], 4
      %s59 = int_to_ptr.vmem [resolvable:$true] %s58
      %64 = dma.hbm_to_vmem [thread:$0]  %s57, 512, %s59, [#allocation9], 128, 128, 8
    $region17: #{tpu_custom_call.1} parent=1 // pred_fallthru
      _
    // Predicated region
    $region18: #{tpu_custom_call.1} parent=1 // pred_check
      _
    $region19: #{tpu_custom_call.1} parent=1 // pred_check_branch
      %66 = sbr.rel (0) target = $region21
    $region20: #{tpu_custom_call.1} parent=1 // pred_region
      %68 = dma.done [#allocation3], 512
    $region21: #{tpu_custom_call.1} parent=1 // pred_fallthru
      _
    // Predicated region
    $region22: #{tpu_custom_call.1} parent=1 // pred_check
      _
    $region23: #{tpu_custom_call.1} parent=1 // pred_check_branch
      %70 = sbr.rel (0) target = $region25
    $region24: #{tpu_custom_call.1} parent=1 // pred_region
      %72 = dma.done [#allocation6], 512
    $region25: #{tpu_custom_call.1} parent=1 // pred_fallthru
      _
    // Predicated region
    $region26: #{tpu_custom_call.1} parent=1 // pred_check
      _
    $region27: #{tpu_custom_call.1} parent=1 // pred_check_branch
      %74 = sbr.rel (0) target = $region29
    $region28: #{tpu_custom_call.1} parent=1 // pred_region
      %76 = dma.done [#allocation6], 512
    $region29: #{tpu_custom_call.1} parent=1 // pred_fallthru
      _
    // Predicated region
    $region30: #{tpu_custom_call.1} parent=1 // pred_check
      _
    $region31: #{tpu_custom_call.1} parent=1 // pred_check_branch
      %78 = sbr.rel (0) target = $region33
    $region32: #{tpu_custom_call.1} parent=1 // pred_region
      %80 = dma.done [#allocation9], 512
    $region33: #{tpu_custom_call.1} parent=1 // pred_fallthru
      _
    %v81 = vld [vmem:[#allocation2] sm:$0xff]
    %v82 = vld [vmem:[#allocation2 + $0x8] sm:$0xff]
    %v83 = vld [vmem:[#allocation2 + $0x10] sm:$0xff]
    %v84 = vld [vmem:[#allocation2 + $0x18] sm:$0xff]
    %v85 = vld [vmem:[#allocation5] sm:$0xff]
    %v86 = vld [vmem:[#allocation5 + $0x8] sm:$0xff]
    %v87 = vld [vmem:[#allocation5 + $0x10] sm:$0xff]
    %v88 = vld [vmem:[#allocation5 + $0x18] sm:$0xff]
    %v89 = vld [vmem:[#allocation7] sm:$0xff]
    %v90 = vld [vmem:[#allocation7 + $0x8] sm:$0xff]
    %v91 = vld [vmem:[#allocation7 + $0x10] sm:$0xff]
    %v92 = vld [vmem:[#allocation7 + $0x18] sm:$0xff]
    %v93 = vld [vmem:[#allocation8] sm:$0xff]
    %v94 = vld [vmem:[#allocation8 + $0x8] sm:$0xff]
    %v95 = vld [vmem:[#allocation8 + $0x10] sm:$0xff]
    %v96 = vld [vmem:[#allocation8 + $0x18] sm:$0xff]
    %vm97 = vcmask 523264
    %v99 = vsel %vm97, %v81, 0
    %v102 = vsel %vm97, %v82, 0
    %v105 = vsel %vm97, %v83, 0
    %v108 = vsel %vm97, %v84, 0
    %v111 = vsel %vm97, %v85, 0
    %v114 = vsel %vm97, %v86, 0
    %v117 = vsel %vm97, %v87, 0
    %v120 = vsel %vm97, %v88, 0
    %122 = vmatpush.xpose.msra.mxu0 0.0
    %123 = vmatpush.xpose.msra.mxu0 0.0
    %124 = vmatpush.xpose.msra.mxu0 0.0
    %125 = vmatpush.xpose.msra.mxu0 0.0
    %126 = vmatpush.xpose.msra.mxu0 0.0
    %127 = vmatpush.xpose.msra.mxu0 0.0
    %128 = vmatpush.xpose.msra.mxu0 0.0
    %129 = vmatpush.xpose.msra.mxu0 0.0
    %130 = vmatpush.xpose.msra.mxu0 0.0
    %131 = vmatpush.xpose.msra.mxu0 0.0
    %132 = vmatpush.xpose.msra.mxu0 0.0
    %133 = vmatpush.xpose.msra.mxu0 0.0
    %134 = vmatpush.xpose.msra.mxu0 %v120
    %135 = vmatpush.xpose.msra.mxu0 %v117
    %136 = vmatpush.xpose.msra.mxu0 %v114
    %137 = vmatpush.xpose.msra.mxu0 %v111
    %138 = vmatmul.f32.gmra.mxu0 %v99
    %v139 = vpop.f32.mrf.mxu0
    %v140 = vadd.f32 0.0, %v139
    %141 = vmatmul.f32.gmra.mxu0 %v102
    %v142 = vpop.f32.mrf.mxu0
    %v143 = vadd.f32 0.0, %v142
    %144 = vmatmul.f32.gmra.mxu0 %v105
    %v145 = vpop.f32.mrf.mxu0
    %v146 = vadd.f32 0.0, %v145
    %147 = vmatmul.f32.gmra.mxu0 %v108
    %v148 = vpop.f32.mrf.mxu0
    %v149 = vadd.f32 0.0, %v148
    %150 = vdwg.mxu0
    %vm151 = vcmask 261120
    %v152 = vsel %vm151, %v140, -inf
    %153 = vmax.xlane.f32.xlu0 %v152
    %v154 = vpop.xlane.xlu0 %153
    %v155 = vsel %vm151, %v143, -inf
    %156 = vmax.xlane.f32.xlu0 %v155
    %v157 = vpop.xlane.xlu0 %156
    %v158 = vsel %vm151, %v146, -inf
    %159 = vmax.xlane.f32.xlu0 %v158
    %v160 = vpop.xlane.xlu0 %159
    %v161 = vsel %vm151, %v149, -inf
    %162 = vmax.xlane.f32.xlu0 %v161
    %v163 = vpop.xlane.xlu0 %162
    %v164 = vsub.f32 %v140, %v154
    %v165 = vsub.f32 %v143, %v157
    %v166 = vsub.f32 %v146, %v160
    %v167 = vsub.f32 %v149, %v163
    %v168 = vmul.f32 %v164, 1.442695
    %v169 = vpow.pop %v168
    %v170 = vmul.f32 %v165, 1.442695
    %v171 = vpow.pop %v170
    %v172 = vmul.f32 %v166, 1.442695
    %v173 = vpow.pop %v172
    %v174 = vmul.f32 %v167, 1.442695
    %v175 = vpow.pop %v174
    %v176 = vsel %vm151, %v169, 0.0
    %177 = vadd.xlane.f32.xlu0 %v176
    %v178 = vpop.xlane.xlu0 %177
    %v179 = vsel %vm151, %v171, 0.0
    %180 = vadd.xlane.f32.xlu0 %v179
    %v181 = vpop.xlane.xlu0 %180
    %v182 = vsel %vm151, %v173, 0.0
    %183 = vadd.xlane.f32.xlu0 %v182
    %v184 = vpop.xlane.xlu0 %183
    %v185 = vsel %vm151, %v175, 0.0
    %186 = vadd.xlane.f32.xlu0 %v185
    %v187 = vpop.xlane.xlu0 %186
    %v188 = vrcp.pop %v178
    %v189 = vmul.f32 %v178, %v188
    %v190 = vsub.f32 1.0, %v189
    %v191 = vmul.f32 %v188, %v190
    %v192 = vadd.f32 %v188, %v191
    %vm193 = vweird.f32 %v178
    %vm194 = vweird.f32 %v188
    %vm195 = vmor %vm193, %vm194
    %v196 = vsel %vm195, %v188, %v192
    %v197 = vand.u32 2147483647, %v178
    %vm198 = vcmp.eq.f32.partialorder %v197, 8.507059e+37
    %v199 = vand.u32 %v178, 2147483648
    %v200 = vor.u32 1.1754944e-38, %v199
    %v201 = vsel %vm198, %v200, %v196
    %v202 = vmul.f32 %v169, %v201
    %v203 = vrcp.pop %v181
    %v204 = vmul.f32 %v181, %v203
    %v205 = vsub.f32 1.0, %v204
    %v206 = vmul.f32 %v203, %v205
    %v207 = vadd.f32 %v203, %v206
    %vm208 = vweird.f32 %v181
    %vm209 = vweird.f32 %v203
    %vm210 = vmor %vm208, %vm209
    %v211 = vsel %vm210, %v203, %v207
    %v212 = vand.u32 2147483647, %v181
    %vm213 = vcmp.eq.f32.partialorder %v212, 8.507059e+37
    %v214 = vand.u32 %v181, 2147483648
    %v215 = vor.u32 1.1754944e-38, %v214
    %v216 = vsel %vm213, %v215, %v211
    %v217 = vmul.f32 %v171, %v216
    %v218 = vrcp.pop %v184
    %v219 = vmul.f32 %v184, %v218
    %v220 = vsub.f32 1.0, %v219
    %v221 = vmul.f32 %v218, %v220
    %v222 = vadd.f32 %v218, %v221
    %vm223 = vweird.f32 %v184
    %vm224 = vweird.f32 %v218
    %vm225 = vmor %vm223, %vm224
    %v226 = vsel %vm225, %v218, %v222
    %v227 = vand.u32 2147483647, %v184
    %vm228 = vcmp.eq.f32.partialorder %v227, 8.507059e+37
    %v229 = vand.u32 %v184, 2147483648
    %v230 = vor.u32 1.1754944e-38, %v229
    %v231 = vsel %vm228, %v230, %v226
    %v232 = vmul.f32 %v173, %v231
    %v233 = vrcp.pop %v187
    %v234 = vmul.f32 %v187, %v233
    %v235 = vsub.f32 1.0, %v234
    %v236 = vmul.f32 %v233, %v235
    %v237 = vadd.f32 %v233, %v236
    %vm238 = vweird.f32 %v187
    %vm239 = vweird.f32 %v233
    %vm240 = vmor %vm238, %vm239
    %v241 = vsel %vm240, %v233, %v237
    %v242 = vand.u32 2147483647, %v187
    %vm243 = vcmp.eq.f32.partialorder %v242, 8.507059e+37
    %v244 = vand.u32 %v187, 2147483648
    %v245 = vor.u32 1.1754944e-38, %v244
    %v246 = vsel %vm243, %v245, %v241
    %v247 = vmul.f32 %v175, %v246
    %v248 = vmul.f32 %v202, %v93
    %v249 = vmul.f32 %v217, %v94
    %v250 = vmul.f32 %v232, %v95
    %v251 = vmul.f32 %v247, %v96
    %v253 = vsel %vm151, %v248, 0
    %v256 = vsel %vm151, %v249, 0
    %v259 = vsel %vm151, %v250, 0
    %v262 = vsel %vm151, %v251, 0
    %264 = vmatpush.msra.mxu0 0.0
    %265 = vmatpush.msra.mxu0 0.0
    %266 = vmatpush.msra.mxu0 0.0
    %267 = vmatpush.msra.mxu0 0.0
    %268 = vmatpush.msra.mxu0 0.0
    %269 = vmatpush.msra.mxu0 0.0
    %270 = vmatpush.msra.mxu0 0.0
    %271 = vmatpush.msra.mxu0 0.0
    %272 = vmatpush.msra.mxu0 0.0
    %273 = vmatpush.msra.mxu0 0.0
    %274 = vmatpush.msra.mxu0 0.0
    %275 = vmatpush.msra.mxu0 0.0
    %276 = vmatpush.msra.mxu0 %v92
    %277 = vmatpush.msra.mxu0 %v91
    %278 = vmatpush.msra.mxu0 %v90
    %279 = vmatpush.msra.mxu0 %v89
    %280 = vmatmul.f32.gmra.mxu0 %v253
    %v281 = vpop.f32.mrf.mxu0
    %v282 = vadd.f32 0.0, %v281
    %283 = vmatmul.f32.gmra.mxu0 %v256
    %v284 = vpop.f32.mrf.mxu0
    %v285 = vadd.f32 0.0, %v284
    %286 = vmatmul.f32.gmra.mxu0 %v259
    %v287 = vpop.f32.mrf.mxu0
    %v288 = vadd.f32 0.0, %v287
    %289 = vmatmul.f32.gmra.mxu0 %v262
    %v290 = vpop.f32.mrf.mxu0
    %v291 = vadd.f32 0.0, %v290
    %292 = vdwg.mxu0
    %293 = vst [vmem:[#allocation10] sm:$0xff] %v282
    %294 = vst [vmem:[#allocation10 + $0x8] sm:$0xff] %v285
    %295 = vst [vmem:[#allocation10 + $0x10] sm:$0xff] %v288
    %296 = vst [vmem:[#allocation10 + $0x18] sm:$0xff] %v291
    // Predicated region
    $region34: #{tpu_custom_call.1} parent=1 // pred_check
      _
    $region35: #{tpu_custom_call.1} parent=1 // pred_check_branch
      %298 = sbr.rel (0) target = $region37
    $region36: #{tpu_custom_call.1} parent=1 // pred_region
      %300 = vsyncadd [#allocation4], 0
      %s301 = sshll.u32 [#allocation10], 4
      %s302 = int_to_ptr.vmem [resolvable:$true] %s301
      %s303 = sshll.u32 %s4, 4
      %s304 = int_to_ptr.hbm [resolvable:$true] %s303
      %309 = dma.vmem_to_hbm [thread:$0]  %s302, 512, %s304, [#allocation4], 128, 128, 8
    $region37: #{tpu_custom_call.1} parent=1 // pred_fallthru
      _
    // Predicated region
    $region38: #{tpu_custom_call.1} parent=1 // pred_check
      _
    $region39: #{tpu_custom_call.1} parent=1 // pred_check_branch
      %311 = sbr.rel (0) target = $region41
    $region40: #{tpu_custom_call.1} parent=1 // pred_region
      %313 = dma.done [#allocation4], 512
    $region41: #{tpu_custom_call.1} parent=1 // pred_fallthru
      _
    %314 = vsyncpa [#allocation3], 1
    %315 = vsyncpa [#allocation6], 1
    %316 = vsyncpa [#allocation9], 1
    %317 = vsyncpa [#allocation4], 1

</llo_original>
